<compile_context>
chip_gen: v7x
topology: tpu7x:2x2x1
jax: 0.10.0
libtpu: 0.0.40
codegen_flags: <defaults>
</compile_context>

<pallas_src>
import functools

import jax
import jax.numpy as jnp
from jax.experimental import pallas as pl
from jax.experimental.pallas import tpu as pltpu

NEG_SLOPE = 0.01     # F.leaky_relu default
LANE = 128
SUBLANE = 8


def _leaky_relu(x):
    return jnp.where(x > 0, x, NEG_SLOPE * x)


def _round_up(x, m):
    return (x + m - 1) // m * m


# --------------------------------------------------------------------------- #
# Kernel: 3 MXU matmuls + leaky_relu + the one remaining BN affine (mid), fused.
# --------------------------------------------------------------------------- #
def mlp_2hl_kernel(x_ref,                      # (bm, dim_in)  f32
                   w1_ref, b1_ref,             # dense1   (bn2 folded in)
                   w2_ref, b2_ref,             # dense2   (batch_norm2 folded in)
                   s2_ref, t2_ref,             # batch_norm3 affine (mid path only)
                   w3_ref, b3_ref,             # dense3   (batch_norm3 folded in)
                   mid_ref, out_ref):
    # In-kernel cast of the activation tile (VPU filler hidden under the MXU).
    x = x_ref[...].astype(w1_ref.dtype)

    # dense1 (+ folded bn2) + leaky_relu
    a1 = _leaky_relu(jnp.dot(x, w1_ref[...],
                             preferred_element_type=jnp.float32) + b1_ref[...])

    # dense2 (+ folded batch_norm2 / eval-dropout2) + leaky_relu
    a2 = _leaky_relu(jnp.dot(a1.astype(w2_ref.dtype), w2_ref[...],
                             preferred_element_type=jnp.float32) + b2_ref[...])

    # dense3 with batch_norm3 folded into (w3, b3): the MXU push starts the
    # moment a2 is ready (no serial VPU-affine dependency on the critical path).
    out_ref[...] = (jnp.dot(a2.astype(w3_ref.dtype), w3_ref[...],
                            preferred_element_type=jnp.float32)
                    + b3_ref[...]).astype(out_ref.dtype)

    # middle_feat = batch_norm3(a2) (+ eval-dropout3 == identity).
    mid_ref[...] = (a2 * s2_ref[...] + t2_ref[...]).astype(mid_ref.dtype)


# --------------------------------------------------------------------------- #
# Parameter glue (plain JAX): weight_norm, BN folding, lane padding.
# --------------------------------------------------------------------------- #
def _bn_fold(gamma, beta, mean, var, eps=1e-5):
    scale = gamma / jnp.sqrt(var + eps)
    return scale, beta - mean * scale                      # 1-D (F,)


def _weight_norm_t(v, g):
    # nn.utils.weight_norm, dim=0: per-output-row norm of v (out, in); return (in, out).
    norm = jnp.sqrt(jnp.sum(v * v, axis=1, keepdims=True))
    return (g[:, None] * v / norm).T


def _pad2(a, rows, cols):
    return jnp.pad(a, ((0, rows - a.shape[0]), (0, cols - a.shape[1])))


@functools.lru_cache(maxsize=None)
def _single_buffer_supported():
    """Probe pipeline_mode=pl.Buffered(1) on a grid-invariant BlockSpec.

    Runs a tiny add kernel once; returns False (-> default double buffering)
    if the feature is unavailable in the installed JAX/Mosaic."""
    if not hasattr(pl, "Buffered"):
        return False
    try:
        def k(x_ref, w_ref, o_ref):
            o_ref[...] = x_ref[...] + w_ref[...]

        f = pl.pallas_call(
            k,
            out_shape=jax.ShapeDtypeStruct((16, 128), jnp.float32),
            grid=(2,),
            in_specs=[
                pl.BlockSpec((8, 128), lambda i: (i, 0)),
                pl.BlockSpec((8, 128), lambda i: (0, 0),
                             pipeline_mode=pl.Buffered(1)),
            ],
            out_specs=pl.BlockSpec((8, 128), lambda i: (i, 0)),
        )
        x = jnp.zeros((16, 128), jnp.float32)
        w = jnp.ones((8, 128), jnp.float32)
        jax.block_until_ready(jax.jit(f)(x, w))
        return True
    except Exception:
        return False


@functools.partial(
    jax.jit,
    static_argnames=("block_m", "matmul_dtype", "mid_dtype",
                     "return_padded", "single_buffer"))
def _mlp_2hl_forward_impl(x, lower_f, params, *, block_m, matmul_dtype,
                          mid_dtype, return_padded, single_buffer):
    if lower_f is not None:
        x = jnp.concatenate([x, lower_f], axis=1)          # torch.cat(dim=1)
        s0, t0 = _bn_fold(*params["bn2"])
    else:
        # stage 0: the module skips bn2 entirely -> identity fold is exact.
        s0 = jnp.ones((x.shape[1],), jnp.float32)
        t0 = jnp.zeros((x.shape[1],), jnp.float32)

    n, dim_in = x.shape

    w1 = _weight_norm_t(params["dense1_v"], params["dense1_g"])   # (dim_in, h1)
    w2 = _weight_norm_t(params["dense2_v"], params["dense2_g"])   # (h1, h2)
    w3 = _weight_norm_t(params["dense3_v"], params["dense3_g"])   # (h2, nt)
    h1, h2, nt = w1.shape[1], w2.shape[1], w3.shape[1]

    # Fold every affine that precedes a matmul into that matmul:
    #   (x*s + t) @ w + b  ==  x @ (s[:,None]*w) + (t @ w + b)
    w1f = s0[:, None] * w1
    b1f = t0 @ w1 + params["dense1_b"]
    s1, t1 = _bn_fold(*params["batch_norm2"])
    w2f = s1[:, None] * w2
    b2f = t1 @ w2 + params["dense2_b"]
    s2, t2 = _bn_fold(*params["batch_norm3"])   # mid is an output -> keep s2/t2 too
    w3f = s2[:, None] * w3                      # fold batch_norm3 into dense3
    b3f = t2 @ w3 + params["dense3_b"]

    # Lane-dense padding of the matmul N dims only (multiples of 128).  The K of
    # the first matmul stays at the true dim_in (block last dim == full array dim
    # is legal), so the activations need no feature padding / wrapper cast pass.
    h1_p, h2_p, nt_p = (_round_up(d, LANE) for d in (h1, h2, nt))

    # Batch tile: as big as possible (amortize ~0.35us/step, fill MXU M), clamped
    # to the batch.  Force >= 2 grid steps whenever the batch allows so v7x's two
    # TensorCores both get work under the "parallel" grid axis.
    n8 = _round_up(n, SUBLANE)
    bm = max(SUBLANE, min(_round_up(block_m, SUBLANE), n8))
    if n8 // bm < 2 and n8 >= 2 * SUBLANE:
        bm = _round_up(pl.cdiv(n8, 2), SUBLANE)
    n_p = _round_up(n, bm)
    grid = n_p // bm

    # Pad batch rows only when actually required; keep f32 (cast is in-kernel).
    xp = x if x.dtype == jnp.float32 else x.astype(jnp.float32)
    if n_p != n:
        xp = jnp.pad(xp, ((0, n_p - n), (0, 0)))

    w1p = _pad2(w1f, dim_in, h1_p).astype(matmul_dtype)
    w2p = _pad2(w2f, h1_p, h2_p).astype(matmul_dtype)
    w3p = _pad2(w3f, h2_p, nt_p).astype(matmul_dtype)
    b1p = jnp.pad(b1f, (0, h1_p - h1))[None, :].astype(jnp.float32)
    b2p = jnp.pad(b2f, (0, h2_p - h2))[None, :].astype(jnp.float32)
    b3p = jnp.pad(b3f, (0, nt_p - nt))[None, :].astype(jnp.float32)
    s2p = jnp.pad(s2, (0, h2_p - h2), constant_values=1.0)[None, :].astype(jnp.float32)
    t2p = jnp.pad(t2, (0, h2_p - h2))[None, :].astype(jnp.float32)

    row = lambda i: (i, 0)        # tiled over batch rows
    rep = lambda i: (0, 0)        # grid-invariant (weights / vectors)

    if single_buffer and hasattr(pl, "Buffered"):
        # Grid-invariant blocks are never re-fetched: single-buffer them.
        inv = lambda shape: pl.BlockSpec(shape, rep, pipeline_mode=pl.Buffered(1))
        w_bufs = 1
    else:
        inv = lambda shape: pl.BlockSpec(shape, rep)
        w_bufs = 2

    # VMEM budget: realistic static estimate x3, capped well below v7x's 64 MiB.
    mm_b = jnp.dtype(matmul_dtype).itemsize
    mid_b = jnp.dtype(mid_dtype).itemsize
    est = (2 * bm * dim_in * 4                                    # x tiles (f32, dbl-buf)
           + 2 * bm * (h2_p * mid_b + nt_p * 4)                   # output tiles (dbl-buf)
           + w_bufs * mm_b * (dim_in * h1_p + h1_p * h2_p + h2_p * nt_p)  # weights
           + w_bufs * 4 * 4 * (h1_p + h2_p + nt_p)                # bias / affine vectors
           + 2 * 4 * bm * (h1_p + h2_p))                          # f32 a1/a2 temporaries
    vmem_limit = int(min(max(3 * est, 8 << 20), 48 << 20))

    grid_spec = pltpu.PrefetchScalarGridSpec(
        num_scalar_prefetch=0,
        grid=(grid,),
        in_specs=[
            pl.BlockSpec((bm, dim_in), row),    # x  (f32, true feature dim)
            inv((dim_in, h1_p)),                # w1 (bn2 folded)
            inv((1, h1_p)),                     # b1
            inv((h1_p, h2_p)),                  # w2 (batch_norm2 folded)
            inv((1, h2_p)),                     # b2
            inv((1, h2_p)),                     # s2 (batch_norm3 -> mid)
            inv((1, h2_p)),                     # t2
            inv((h2_p, nt_p)),                  # w3 (batch_norm3 folded)
            inv((1, nt_p)),                     # b3
        ],
        out_specs=[
            pl.BlockSpec((bm, h2_p), row),      # middle_feat (lane-dense)
            pl.BlockSpec((bm, nt_p), row),      # out (lane-dense)
        ],
    )

    mid_p, out_p = pl.pallas_call(
        mlp_2hl_kernel,
        out_shape=(
            jax.ShapeDtypeStruct((n_p, h2_p), mid_dtype),
            jax.ShapeDtypeStruct((n_p, nt_p), jnp.float32),
        ),
        grid_spec=grid_spec,
        compiler_params=pltpu.CompilerParams(
            dimension_semantics=("parallel",),
            vmem_limit_bytes=vmem_limit),
    )(xp, w1p, b1p, w2p, b2p, s2p, t2p, w3p, b3p)

    if return_padded:
        return mid_p, out_p                     # zero extra HBM traffic
    mid = mid_p if (n_p == n and h2_p == h2) else mid_p[:n, :h2]
    out = out_p if (n_p == n and nt_p == nt) else out_p[:n, :nt]
    return mid, out


def mlp_2hl_forward(x, lower_f, params, *, block_m=512,
                    matmul_dtype=jnp.bfloat16, mid_dtype=None,
                    return_padded=False):
    """Returns (middle_feat, out) like the PyTorch module in eval mode.

    matmul_dtype: MXU operand dtype (bf16 default; f32 for bit-accurate checks).
    mid_dtype:    dtype of the middle_feat output; None -> same as matmul_dtype
                  (bf16 halves the dominant HBM write stream; flag per review).
    return_padded: return lane/batch-padded buffers and skip the slice passes.
    """
    if mid_dtype is None:
        mid_dtype = matmul_dtype
    return _mlp_2hl_forward_impl(
        x, lower_f, params,
        block_m=block_m, matmul_dtype=matmul_dtype, mid_dtype=mid_dtype,
        return_padded=return_padded, single_buffer=_single_buffer_supported())


# --------------------------------------------------------------------------- #
# Pure-JAX reference (unfolded, unpadded) of the PyTorch module, eval mode.
# --------------------------------------------------------------------------- #
def reference_forward(x, lower_f, params):
    if lower_f is not None:
        x = jnp.concatenate([x, lower_f], axis=1)
        s0, t0 = _bn_fold(*params["bn2"])
        x = x * s0 + t0
    w1 = _weight_norm_t(params["dense1_v"], params["dense1_g"])
    a1 = _leaky_relu(x @ w1 + params["dense1_b"])
    s1, t1 = _bn_fold(*params["batch_norm2"])
    a1 = a1 * s1 + t1
    w2 = _weight_norm_t(params["dense2_v"], params["dense2_g"])
    a2 = _leaky_relu(a1 @ w2 + params["dense2_b"])
    s2, t2 = _bn_fold(*params["batch_norm3"])
    mid = a2 * s2 + t2
    w3 = _weight_norm_t(params["dense3_v"], params["dense3_g"])
    out = mid @ w3 + params["dense3_b"]
    return mid, out


def init_params(key, feat_d, hidden1, hidden2, n_targets):
    """Deterministic synthetic parameters matching the module's __init__ shapes."""
    dim_in = feat_d + hidden1  # stage > 0: feat_d + hidden_size
    ks = jax.random.split(key, 16)
    u = lambda k, shape, lo=-0.1, hi=0.1: jax.random.uniform(
        k, shape, jnp.float32, lo, hi)

    def bn(k, dim):
        k1, k2, k3, k4 = jax.random.split(k, 4)
        return (u(k1, (dim,), 0.5, 1.5), u(k2, (dim,)),
                u(k3, (dim,)), u(k4, (dim,), 0.5, 1.5))

    return {
        "bn2": bn(ks[0], dim_in),
        "dense1_v": u(ks[1], (hidden1, dim_in)),
        "dense1_g": u(ks[2], (hidden1,), 0.5, 1.5),
        "dense1_b": u(ks[3], (hidden1,)),
        "batch_norm2": bn(ks[4], hidden1),
        "dense2_v": u(ks[5], (hidden2, hidden1)),
        "dense2_g": u(ks[6], (hidden2,), 0.5, 1.5),
        "dense2_b": u(ks[7], (hidden2,)),
        "batch_norm3": bn(ks[8], hidden2),
        "dense3_v": u(ks[9], (n_targets, hidden2)),
        "dense3_g": u(ks[10], (n_targets,), 0.5, 1.5),
        "dense3_b": u(ks[11], (n_targets,)),
    }


if __name__ == "__main__":
    # Small shapes consistent with GrowNet usage (stage > 0):
    #   dim_in = feat_d + hidden_size ; lower_f has hidden_size features.
    N, FEAT_D, HIDDEN, N_TARGETS = 16, 32, 32, 16

    key = jax.random.PRNGKey(0)
    k_x, k_lf, k_p = jax.random.split(key, 3)
    x = jax.random.normal(k_x, (N, FEAT_D), jnp.float32)
    lower_f = jax.random.normal(k_lf, (N, HIDDEN), jnp.float32)
    params = init_params(k_p, FEAT_D, HIDDEN, HIDDEN, N_TARGETS)

    ref_mid, ref_out = reference_forward(x, lower_f, params)

    # 1) f32-matmul path: tight check of the fused/folded kernel vs reference.
    mid32, out32 = mlp_2hl_forward(x, lower_f, params, matmul_dtype=jnp.float32)
    jax.block_until_ready((mid32, out32, ref_mid, ref_out))
    assert mid32.shape == (N, HIDDEN) and out32.shape == (N, N_TARGETS)
    assert bool(jnp.allclose(mid32, ref_mid, atol=2e-2, rtol=2e-2)), "middle_feat mismatch (f32)"
    assert bool(jnp.allclose(out32, ref_out, atol=2e-2, rtol=2e-2)), "out mismatch (f32)"

    # 2) Default perf path: bf16 MXU operands + bf16 middle_feat writeback,
    #    f32 accumulation / elementwise.  Checked against the reference with a
    #    bf16-appropriate tolerance (review concern: folding regressions must
    #    not hide behind a finiteness-only check).
    mid, out = mlp_2hl_forward(x, lower_f, params)
    jax.block_until_ready((mid, out))
    assert mid.shape == (N, HIDDEN) and out.shape == (N, N_TARGETS)
    assert mid.dtype == jnp.bfloat16
    assert bool(jnp.all(jnp.isfinite(mid.astype(jnp.float32)))) and bool(jnp.all(jnp.isfinite(out)))
    assert bool(jnp.allclose(mid.astype(jnp.float32), ref_mid, atol=1e-1, rtol=5e-2)), \
        "middle_feat mismatch (bf16)"
    assert bool(jnp.allclose(out, ref_out, atol=1e-1, rtol=5e-2)), "out mismatch (bf16)"

    print("KERNEL_OK")
</pallas_src>

<mosaic_0001>
module attributes {stable_mosaic.version = 11 : i64} {
  func.func @k(%arg0: i32, %arg1: memref<8x128xf32, #tpu.memory_space<vmem>>, %arg2: memref<8x128xf32, #tpu.memory_space<vmem>>, %arg3: memref<8x128xf32, #tpu.memory_space<vmem>>) attributes {dimension_semantics = [#tpu.dimension_semantics<arbitrary>], iteration_bounds = array<i64: 2>, scalar_prefetch = 0 : i64, scratch_operands = 0 : i64, tpu.core_type = #tpu.core_type<tc>, window_params = [{transform_indices = @transform_0, window_bounds = array<i64: 8, 128>}, {pipeline_mode = #tpu.pipeline_mode<synchronous>, transform_indices = @transform_1, window_bounds = array<i64: 8, 128>}, {transform_indices = @transform_2, window_bounds = array<i64: 8, 128>}]} {
    %c0 = arith.constant 0 : index
    %c0_0 = arith.constant 0 : index
    %0 = vector.load %arg1[%c0, %c0_0] : memref<8x128xf32, #tpu.memory_space<vmem>>, vector<8x128xf32>
    %c0_1 = arith.constant 0 : index
    %c0_2 = arith.constant 0 : index
    %1 = vector.load %arg2[%c0_1, %c0_2] : memref<8x128xf32, #tpu.memory_space<vmem>>, vector<8x128xf32>
    %2 = arith.addf %0, %1 : vector<8x128xf32>
    %c0_3 = arith.constant 0 : index
    %c0_4 = arith.constant 0 : index
    %3 = vector.load %arg3[%c0_3, %c0_4] : memref<8x128xf32, #tpu.memory_space<vmem>>, vector<8x128xf32>
    tpu.vector_store %arg3[%c0_3, %c0_4], %2 {strides = array<i32>} : memref<8x128xf32, #tpu.memory_space<vmem>>, vector<8x128xf32>,
    return
  }
  func.func @transform_0(%arg0: i32) -> (i32, i32) {
    %c0_i32 = arith.constant 0 : i32
    %c0_i32_0 = arith.constant 0 : i32
    return %arg0, %c0_i32 : i32, i32
  }
  func.func @transform_1(%arg0: i32) -> (i32, i32) {
    %c0_i32 = arith.constant 0 : i32
    %c0_i32_0 = arith.constant 0 : i32
    %c0_i32_1 = arith.constant 0 : i32
    return %c0_i32, %c0_i32_0 : i32, i32
  }
  func.func @transform_2(%arg0: i32) -> (i32, i32) {
    %c0_i32 = arith.constant 0 : i32
    %c0_i32_0 = arith.constant 0 : i32
    return %arg0, %c0_i32 : i32, i32
  }
}

module attributes {stable_mosaic.version = 11 : i64} {
  func.func @mlp_2hl_kernel(%arg0: i32, %arg1: memref<8x64xf32, #tpu.memory_space<vmem>>, %arg2: memref<64x128xf32, #tpu.memory_space<vmem>>, %arg3: memref<1x128xf32, #tpu.memory_space<vmem>>, %arg4: memref<128x128xf32, #tpu.memory_space<vmem>>, %arg5: memref<1x128xf32, #tpu.memory_space<vmem>>, %arg6: memref<1x128xf32, #tpu.memory_space<vmem>>, %arg7: memref<1x128xf32, #tpu.memory_space<vmem>>, %arg8: memref<128x128xf32, #tpu.memory_space<vmem>>, %arg9: memref<1x128xf32, #tpu.memory_space<vmem>>, %arg10: memref<8x128xf32, #tpu.memory_space<vmem>>, %arg11: memref<8x128xf32, #tpu.memory_space<vmem>>) attributes {dimension_semantics = [#tpu.dimension_semantics<parallel>], iteration_bounds = array<i64: 2>, scalar_prefetch = 0 : i64, scratch_operands = 0 : i64, tpu.core_type = #tpu.core_type<tc>, window_params = [{transform_indices = @transform_0, window_bounds = array<i64: 8, 64>}, {pipeline_mode = #tpu.pipeline_mode<synchronous>, transform_indices = @transform_1, window_bounds = array<i64: 64, 128>}, {pipeline_mode = #tpu.pipeline_mode<synchronous>, transform_indices = @transform_2, window_bounds = array<i64: 1, 128>}, {pipeline_mode = #tpu.pipeline_mode<synchronous>, transform_indices = @transform_3, window_bounds = array<i64: 128, 128>}, {pipeline_mode = #tpu.pipeline_mode<synchronous>, transform_indices = @transform_4, window_bounds = array<i64: 1, 128>}, {pipeline_mode = #tpu.pipeline_mode<synchronous>, transform_indices = @transform_5, window_bounds = array<i64: 1, 128>}, {pipeline_mode = #tpu.pipeline_mode<synchronous>, transform_indices = @transform_6, window_bounds = array<i64: 1, 128>}, {pipeline_mode = #tpu.pipeline_mode<synchronous>, transform_indices = @transform_7, window_bounds = array<i64: 128, 128>}, {pipeline_mode = #tpu.pipeline_mode<synchronous>, transform_indices = @transform_8, window_bounds = array<i64: 1, 128>}, {transform_indices = @transform_9, window_bounds = array<i64: 8, 128>}, {transform_indices = @transform_10, window_bounds = array<i64: 8, 128>}]} {
    %c0 = arith.constant 0 : index
    %c0_0 = arith.constant 0 : index
    %0 = vector.load %arg1[%c0, %c0_0] : memref<8x64xf32, #tpu.memory_space<vmem>>, vector<8x64xf32>
    %c0_1 = arith.constant 0 : index
    %c0_2 = arith.constant 0 : index
    %1 = vector.load %arg2[%c0_1, %c0_2] : memref<64x128xf32, #tpu.memory_space<vmem>>, vector<64x128xf32>
    %cst = arith.constant dense<0.000000e+00> : vector<8x128xf32>
    %2 = tpu.matmul %0, %1, %cst {dimension_numbers = #tpu.dot_dimension_numbers<[1], [0], [0], [1], [0, 0, 1, 1], [], []>} : vector<8x64xf32>, vector<64x128xf32>, vector<8x128xf32> -> vector<8x128xf32>
    %c0_3 = arith.constant 0 : index
    %c0_4 = arith.constant 0 : index
    %3 = vector.load %arg3[%c0_3, %c0_4] : memref<1x128xf32, #tpu.memory_space<vmem>>, vector<1x128xf32>
    %4 = vector.broadcast %3 : vector<1x128xf32> to vector<8x128xf32>
    %5 = arith.addf %2, %4 : vector<8x128xf32>
    %cst_5 = arith.constant 0.000000e+00 : f32
    %6 = vector.broadcast %cst_5 : f32 to vector<8x128xf32>
    %7 = arith.cmpf ogt, %5, %6 : vector<8x128xf32>
    %cst_6 = arith.constant 0.00999999977 : f32
    %8 = vector.broadcast %cst_6 : f32 to vector<8x128xf32>
    %9 = arith.mulf %8, %5 : vector<8x128xf32>
    %10 = arith.select %7, %5, %9 : vector<8x128xi1>, vector<8x128xf32>
    %c0_7 = arith.constant 0 : index
    %c0_8 = arith.constant 0 : index
    %11 = vector.load %arg4[%c0_7, %c0_8] : memref<128x128xf32, #tpu.memory_space<vmem>>, vector<128x128xf32>
    %cst_9 = arith.constant dense<0.000000e+00> : vector<8x128xf32>
    %12 = tpu.matmul %10, %11, %cst_9 {dimension_numbers = #tpu.dot_dimension_numbers<[1], [0], [0], [1], [0, 0, 1, 1], [], []>} : vector<8x128xf32>, vector<128x128xf32>, vector<8x128xf32> -> vector<8x128xf32>
    %c0_10 = arith.constant 0 : index
    %c0_11 = arith.constant 0 : index
    %13 = vector.load %arg5[%c0_10, %c0_11] : memref<1x128xf32, #tpu.memory_space<vmem>>, vector<1x128xf32>
    %14 = vector.broadcast %13 : vector<1x128xf32> to vector<8x128xf32>
    %15 = arith.addf %12, %14 : vector<8x128xf32>
    %cst_12 = arith.constant 0.000000e+00 : f32
    %16 = vector.broadcast %cst_12 : f32 to vector<8x128xf32>
    %17 = arith.cmpf ogt, %15, %16 : vector<8x128xf32>
    %cst_13 = arith.constant 0.00999999977 : f32
    %18 = vector.broadcast %cst_13 : f32 to vector<8x128xf32>
    %19 = arith.mulf %18, %15 : vector<8x128xf32>
    %20 = arith.select %17, %15, %19 : vector<8x128xi1>, vector<8x128xf32>
    %c0_14 = arith.constant 0 : index
    %c0_15 = arith.constant 0 : index
    %21 = vector.load %arg8[%c0_14, %c0_15] : memref<128x128xf32, #tpu.memory_space<vmem>>, vector<128x128xf32>
    %cst_16 = arith.constant dense<0.000000e+00> : vector<8x128xf32>
    %22 = tpu.matmul %20, %21, %cst_16 {dimension_numbers = #tpu.dot_dimension_numbers<[1], [0], [0], [1], [0, 0, 1, 1], [], []>} : vector<8x128xf32>, vector<128x128xf32>, vector<8x128xf32> -> vector<8x128xf32>
    %c0_17 = arith.constant 0 : index
    %c0_18 = arith.constant 0 : index
    %23 = vector.load %arg9[%c0_17, %c0_18] : memref<1x128xf32, #tpu.memory_space<vmem>>, vector<1x128xf32>
    %24 = vector.broadcast %23 : vector<1x128xf32> to vector<8x128xf32>
    %25 = arith.addf %22, %24 : vector<8x128xf32>
    %c0_19 = arith.constant 0 : index
    %c0_20 = arith.constant 0 : index
    %26 = vector.load %arg11[%c0_19, %c0_20] : memref<8x128xf32, #tpu.memory_space<vmem>>, vector<8x128xf32>
    tpu.vector_store %arg11[%c0_19, %c0_20], %25 {strides = array<i32>} : memref<8x128xf32, #tpu.memory_space<vmem>>, vector<8x128xf32>,
    %c0_21 = arith.constant 0 : index
    %c0_22 = arith.constant 0 : index
    %27 = vector.load %arg6[%c0_21, %c0_22] : memref<1x128xf32, #tpu.memory_space<vmem>>, vector<1x128xf32>
    %28 = vector.broadcast %27 : vector<1x128xf32> to vector<8x128xf32>
    %29 = arith.mulf %20, %28 : vector<8x128xf32>
    %c0_23 = arith.constant 0 : index
    %c0_24 = arith.constant 0 : index
    %30 = vector.load %arg7[%c0_23, %c0_24] : memref<1x128xf32, #tpu.memory_space<vmem>>, vector<1x128xf32>
    %31 = vector.broadcast %30 : vector<1x128xf32> to vector<8x128xf32>
    %32 = arith.addf %29, %31 : vector<8x128xf32>
    %c0_25 = arith.constant 0 : index
    %c0_26 = arith.constant 0 : index
    %33 = vector.load %arg10[%c0_25, %c0_26] : memref<8x128xf32, #tpu.memory_space<vmem>>, vector<8x128xf32>
    tpu.vector_store %arg10[%c0_25, %c0_26], %32 {strides = array<i32>} : memref<8x128xf32, #tpu.memory_space<vmem>>, vector<8x128xf32>,
    return
  }
  func.func @transform_0(%arg0: i32) -> (i32, i32) {
    %c0_i32 = arith.constant 0 : i32
    %c0_i32_0 = arith.constant 0 : i32
    return %arg0, %c0_i32 : i32, i32
  }
  func.func @transform_1(%arg0: i32) -> (i32, i32) {
    %c0_i32 = arith.constant 0 : i32
    %c0_i32_0 = arith.constant 0 : i32
    %c0_i32_1 = arith.constant 0 : i32
    return %c0_i32, %c0_i32_0 : i32, i32
  }
  func.func @transform_2(%arg0: i32) -> (i32, i32) {
    %c0_i32 = arith.constant 0 : i32
    %c0_i32_0 = arith.constant 0 : i32
    %c0_i32_1 = arith.constant 0 : i32
    return %c0_i32, %c0_i32_0 : i32, i32
  }
  func.func @transform_3(%arg0: i32) -> (i32, i32) {
    %c0_i32 = arith.constant 0 : i32
    %c0_i32_0 = arith.constant 0 : i32
    %c0_i32_1 = arith.constant 0 : i32
    return %c0_i32, %c0_i32_0 : i32, i32
  }
  func.func @transform_4(%arg0: i32) -> (i32, i32) {
    %c0_i32 = arith.constant 0 : i32
    %c0_i32_0 = arith.constant 0 : i32
    %c0_i32_1 = arith.constant 0 : i32
    return %c0_i32, %c0_i32_0 : i32, i32
  }
  func.func @transform_5(%arg0: i32) -> (i32, i32) {
    %c0_i32 = arith.constant 0 : i32
    %c0_i32_0 = arith.constant 0 : i32
    %c0_i32_1 = arith.constant 0 : i32
    return %c0_i32, %c0_i32_0 : i32, i32
  }
  func.func @transform_6(%arg0: i32) -> (i32, i32) {
    %c0_i32 = arith.constant 0 : i32
    %c0_i32_0 = arith.constant 0 : i32
    %c0_i32_1 = arith.constant 0 : i32
    return %c0_i32, %c0_i32_0 : i32, i32
  }
  func.func @transform_7(%arg0: i32) -> (i32, i32) {
    %c0_i32 = arith.constant 0 : i32
    %c0_i32_0 = arith.constant 0 : i32
    %c0_i32_1 = arith.constant 0 : i32
    return %c0_i32, %c0_i32_0 : i32, i32
  }
  func.func @transform_8(%arg0: i32) -> (i32, i32) {
    %c0_i32 = arith.constant 0 : i32
    %c0_i32_0 = arith.constant 0 : i32
    %c0_i32_1 = arith.constant 0 : i32
    return %c0_i32, %c0_i32_0 : i32, i32
  }
  func.func @transform_9(%arg0: i32) -> (i32, i32) {
    %c0_i32 = arith.constant 0 : i32
    %c0_i32_0 = arith.constant 0 : i32
    return %arg0, %c0_i32 : i32, i32
  }
  func.func @transform_10(%arg0: i32) -> (i32, i32) {
    %c0_i32 = arith.constant 0 : i32
    %c0_i32_0 = arith.constant 0 : i32
    return %arg0, %c0_i32 : i32, i32
  }
}

</mosaic_0001>

<llo_original>
// kernel: tpu_custom_call.1
$region0: #{tpu_custom_call.1}
  #allocation0 [shape = 'u32[]', space=smem, size = 0x4, offset = 0x4, fixed_abs, tag = 'smem constant byte address 0x4 - core index']
  #allocation1 [shape = 'u32[144,128]{1,0:T(1,128)}', space=vmem, size = 0x12000, scoped, tag = 'internal scratch']
  %s0 = inlined_call_operand.hbm [shape: f32[16,128], index: 0, kind: input, shape index: {}]
  %s1 = inlined_call_operand.hbm [shape: f32[8,128], index: 1, kind: input, shape index: {}]
  %s2 = inlined_call_operand.hbm [shape: f32[16,128], index: 2, kind: output, shape index: {}]
  %s3 = sld [smem:[#allocation0]]
  $region49: #{tpu_custom_call.1} parent=0
    _
  %s5 = ssub.s32 1, %s3
  %s6 = scalar_select 0, %s5, %s3
  $region1: #{tpu_custom_call.1} parent=0
    #allocation2 [shape = 'u8[8192]{0}', space=vmem, size = 0x2000, scoped, tag = 'input window, operand 0']
    #allocation3 [shape = 's32[2]{0}', space=sflag, size = 0x8, scoped, tag = 'scoped memory for tpu_custom_call.1']
    #allocation4 [shape = 's32[2]{0}', space=sflag, size = 0x8, scoped, tag = 'scoped memory for tpu_custom_call.1']
    #allocation5 [shape = 'u8[4096]{0}', space=vmem, size = 0x1000, scoped, tag = 'input window, operand 1, single buffered']
    #allocation6 [shape = 's32[1]{0}', space=sflag, size = 0x4, scoped, tag = 'scoped memory for tpu_custom_call.1']
    #allocation7 [shape = 'u8[8192]{0}', space=vmem, size = 0x2000, scoped, tag = 'output window, operand 0']
    %7 = vsyncpa [#allocation3], 0
    %s8 = scalar_lea.sflag [#allocation3], 1
    %9 = vsyncpa %s8, 0
    %10 = vsyncpa [#allocation6], 0
    %11 = vsyncpa [#allocation4], 0
    %s12 = scalar_lea.sflag [#allocation4], 1
    %13 = vsyncpa %s12, 0
    loop: start=0, step=1, limit=4
    $region2: #{tpu_custom_call.1} parent=1 // loop_pre_header
      _
    $region3: #{tpu_custom_call.1} parent=1 // loop_header
      %s15 = sphi 0, %s19
      %p16 = scmp.ge.s32.totalorder %s15, 4
      %s25 = sphi 0, %s27
      %s28 = sphi 0, %s25
      %s29 = sphi 0, %s28
      %s45 = sphi 0, %s29
      %s49 = sphi 0, %s49
      %s51 = sphi 0, %s49
      %s52 = sphi 0, %s51
      %s66 = sphi 0, %s52
      %s72 = sphi 0, %s74
      %s75 = sphi 0, %s72
      %s76 = sphi 0, %s75
      %s92 = sphi 0, %s76
    $region4: #{tpu_custom_call.1} parent=1 // loop_header_branch
      %18 = sbr.rel (%p16) target = $region8
    $region5: #{tpu_custom_call.1} parent=1 // loop_body
      %s20 = ssub.s32 %s15, 1
      %s21 = ssub.s32 %s15, 2
      %s22 = sadd.s32 %s15, 1
      %s23 = ssub.s32 %s15, %s22
      %p24 = scmp.eq.s32.totalorder %s23, 0
      %s26 = sadd.s32 %s25, 1
      %s27 = scalar_select %p24, %s25, %s26
      %p30 = pneg %p24
      %p31 = scmp.eq.s32.totalorder %s15, 1
      %p32 = por %p30, %p31
      %p33 = scmp.ne.s32.totalorder %s25, %s28
      %p34 = scmp.eq.s32.totalorder %s15, 0
      %p35 = por %p33, %p34
      %p36 = scmp.ne.s32.totalorder %s25, %s28
      %p37 = scmp.eq.s32.totalorder %s20, 1
      %p38 = por %p36, %p37
      %p39 = scmp.ne.s32.totalorder %s28, %s29
      %p40 = scmp.eq.s32.totalorder %s20, 0
      %p41 = por %p39, %p40
      %p42 = scmp.ne.s32.totalorder %s28, %s29
      %p43 = scmp.eq.s32.totalorder %s21, 1
      %p44 = por %p42, %p43
      %p46 = scmp.ne.s32.totalorder %s29, %s45
      %p47 = scmp.eq.s32.totalorder %s21, 0
      %p48 = por %p46, %p47
      %s50 = sadd.s32 %s49, 1
      %p53 = scmp.eq.s32.totalorder %s15, 1
      %p54 = scmp.ne.s32.totalorder %s49, %s51
      %p55 = scmp.eq.s32.totalorder %s15, 0
      %p56 = por %p54, %p55
      %p57 = scmp.ne.s32.totalorder %s49, %s51
      %p58 = scmp.eq.s32.totalorder %s20, 1
      %p59 = por %p57, %p58
      %p60 = scmp.ne.s32.totalorder %s51, %s52
      %p61 = scmp.eq.s32.totalorder %s20, 0
      %p62 = por %p60, %p61
      %p63 = scmp.ne.s32.totalorder %s51, %s52
      %p64 = scmp.eq.s32.totalorder %s21, 1
      %p65 = por %p63, %p64
      %p67 = scmp.ne.s32.totalorder %s52, %s66
      %p68 = scmp.eq.s32.totalorder %s21, 0
      %p69 = por %p67, %p68
      %s70 = ssub.s32 %s15, %s22
      %p71 = scmp.eq.s32.totalorder %s70, 0
      %s73 = sadd.s32 %s72, 1
      %s74 = scalar_select %p71, %s72, %s73
      %p77 = pneg %p71
      %p78 = scmp.eq.s32.totalorder %s15, 1
      %p79 = por %p77, %p78
      %p80 = scmp.ne.s32.totalorder %s72, %s75
      %p81 = scmp.eq.s32.totalorder %s15, 0
      %p82 = por %p80, %p81
      %p83 = scmp.ne.s32.totalorder %s72, %s75
      %p84 = scmp.eq.s32.totalorder %s20, 1
      %p85 = por %p83, %p84
      %p86 = scmp.ne.s32.totalorder %s75, %s76
      %p87 = scmp.eq.s32.totalorder %s20, 0
      %p88 = por %p86, %p87
      %p89 = scmp.ne.s32.totalorder %s75, %s76
      %p90 = scmp.eq.s32.totalorder %s21, 1
      %p91 = por %p89, %p90
      %p93 = scmp.ne.s32.totalorder %s76, %s92
      %p94 = scmp.eq.s32.totalorder %s21, 0
      %p95 = por %p93, %p94
      %p96 = scmp.le.s32.totalorder 1, %s15
      %p97 = scmp.lt.s32.totalorder %s15, 3
      %p98 = pnand %p96, %p97
      %p99 = pneg %p98
      // Predicated region
      $region9: #{tpu_custom_call.1} parent=5 // pred_check
        _
      $region10: #{tpu_custom_call.1} parent=5 // pred_check_branch
        %101 = sbr.rel (%p98) target = $region12
      $region11: #{tpu_custom_call.1} parent=5 // pred_region
        %s102 = ssub.s32 %s15, 1
        // Predicated region
        $region13: #{tpu_custom_call.1} parent=11 // pred_check
          %p103 = pneg %p62
        $region14: #{tpu_custom_call.1} parent=11 // pred_check_branch
          %105 = sbr.rel (%p103) target = $region16
        $region15: #{tpu_custom_call.1} parent=11 // pred_region
          %s107 = ssub.s32 128, 128
          %108 = vsyncadd [#allocation6], %s107
          %s110 = sshll.u32 [#allocation5], 4
          %s111 = int_to_ptr.vmem [resolvable:$true] %s110
          %113 = dma.hbm_to_vmem [thread:$0]  %s1, 128, %s111, [#allocation6]
        $region16: #{tpu_custom_call.1} parent=11 // pred_fallthru
          _
      $region12: #{tpu_custom_call.1} parent=5 // pred_fallthru
        _
      %p114 = scmp.lt.s32.totalorder %s15, 2
      // Predicated region
      $region17: #{tpu_custom_call.1} parent=5 // pred_check
        %p115 = pneg %p114
      $region18: #{tpu_custom_call.1} parent=5 // pred_check_branch
        %117 = sbr.rel (%p115) target = $region20
      $region19: #{tpu_custom_call.1} parent=5 // pred_region
        // Predicated region
        $region21: #{tpu_custom_call.1} parent=19 // pred_check
          %p118 = pneg %p35
        $region22: #{tpu_custom_call.1} parent=19 // pred_check_branch
          %120 = sbr.rel (%p118) target = $region24
        $region23: #{tpu_custom_call.1} parent=19 // pred_region
          %s121 = sand.u32 %s25, 1
          %s122 = scalar_lea.sflag [#allocation3], %s121
          %s123 = sand.u32 %s25, 1
          %s124 = smul.addr %s123, 8
          %s125 = scalar_lea.vmem [#allocation2], %s124
          %s127 = ssub.s32 128, 128
          %128 = vsyncadd %s122, %s127
          %s129 = smul.addr %s15, 128
          %s130 = scalar_lea.hbm %s0, %s129
          %s132 = sshll.u32 %s125, 4
          %s133 = int_to_ptr.vmem [resolvable:$true] %s132
          %135 = dma.hbm_to_vmem [thread:$0]  %s130, 128, %s133, %s122
        $region24: #{tpu_custom_call.1} parent=19 // pred_fallthru
          _
      $region20: #{tpu_custom_call.1} parent=5 // pred_fallthru
        _
      %p136 = scmp.le.s32.totalorder 1, %s15
      %p137 = scmp.lt.s32.totalorder %s15, 3
      %p138 = pnand %p136, %p137
      %p139 = pneg %p138
      // Predicated region
      $region25: #{tpu_custom_call.1} parent=5 // pred_check
        _
      $region26: #{tpu_custom_call.1} parent=5 // pred_check_branch
        %141 = sbr.rel (%p138) target = $region28
      $region27: #{tpu_custom_call.1} parent=5 // pred_region
        %s142 = ssub.s32 %s15, 1
        %s143 = sand.u32 %s28, 1
        %s144 = scalar_lea.sflag [#allocation3], %s143
        %s145 = sand.u32 %s28, 1
        %s146 = smul.addr %s145, 8
        %s147 = scalar_lea.vmem [#allocation2], %s146
        // Predicated region
        $region29: #{tpu_custom_call.1} parent=27 // pred_check
          %p148 = pneg %p41
        $region30: #{tpu_custom_call.1} parent=27 // pred_check_branch
          %150 = sbr.rel (%p148) target = $region32
        $region31: #{tpu_custom_call.1} parent=27 // pred_region
          %151 = dma.done %s144, 128
        $region32: #{tpu_custom_call.1} parent=27 // pred_fallthru
          _
        // Predicated region
        $region33: #{tpu_custom_call.1} parent=27 // pred_check
          %p152 = pneg %p62
        $region34: #{tpu_custom_call.1} parent=27 // pred_check_branch
          %154 = sbr.rel (%p152) target = $region36
        $region35: #{tpu_custom_call.1} parent=27 // pred_region
          %155 = dma.done [#allocation6], 128
        $region36: #{tpu_custom_call.1} parent=27 // pred_fallthru
          _
        %s156 = sand.u32 %s28, 1
        %s157 = scalar_lea.sflag [#allocation3], %s156
        %s158 = sand.u32 %s28, 1
        %s159 = smul.addr %s158, 8
        %s160 = scalar_lea.vmem [#allocation2], %s159
        %p161 = pneg %p41
        %p162 = pneg %p38
        %p163 = pneg %p62
        %p164 = pneg %p59
        %p165 = pneg %p88
        %p166 = pneg %p85
        %s167 = sand.u32 %s75, 1
        %s168 = scalar_lea.sflag [#allocation4], %s167
        %s169 = sand.u32 %s75, 1
        %s170 = smul.addr %s169, 8
        %s171 = scalar_lea.vmem [#allocation7], %s170
        %v172 = vld [vmem:[%s147] sm:$0xff]
        %v173 = vld [vmem:[#allocation5] sm:$0xff]
        %v174 = vadd.f32 %v172, %v173
        %175 = vst [vmem:[%s171] sm:$0xff] %v174
        %s176 = sand.u32 %s75, 1
        %s177 = scalar_lea.sflag [#allocation4], %s176
        %s178 = sand.u32 %s75, 1
        %s179 = smul.addr %s178, 8
        %s180 = scalar_lea.vmem [#allocation7], %s179
        // Predicated region
        $region37: #{tpu_custom_call.1} parent=27 // pred_check
          %p181 = pneg %p85
        $region38: #{tpu_custom_call.1} parent=27 // pred_check_branch
          %183 = sbr.rel (%p181) target = $region40
        $region39: #{tpu_custom_call.1} parent=27 // pred_region
          %s185 = ssub.s32 128, 128
          %186 = vsyncadd %s177, %s185
          %s187 = smul.addr %s20, 128
          %s188 = scalar_lea.hbm %s2, %s187
          %s190 = sshll.u32 %s180, 4
          %s191 = int_to_ptr.vmem [resolvable:$true] %s190
          %193 = dma.vmem_to_hbm [thread:$0]  %s191, 128, %s188, %s177
        $region40: #{tpu_custom_call.1} parent=27 // pred_fallthru
          _
      $region28: #{tpu_custom_call.1} parent=5 // pred_fallthru
        _
      %p194 = scmp.le.s32.totalorder 2, %s15
      // Predicated region
      $region41: #{tpu_custom_call.1} parent=5 // pred_check
        %p195 = pneg %p194
      $region42: #{tpu_custom_call.1} parent=5 // pred_check_branch
        %197 = sbr.rel (%p195) target = $region44
      $region43: #{tpu_custom_call.1} parent=5 // pred_region
        %s198 = ssub.s32 %s15, 2
        // Predicated region
        $region45: #{tpu_custom_call.1} parent=43 // pred_check
          %p199 = pneg %p91
        $region46: #{tpu_custom_call.1} parent=43 // pred_check_branch
          %201 = sbr.rel (%p199) target = $region48
        $region47: #{tpu_custom_call.1} parent=43 // pred_region
          %s202 = sand.u32 %s76, 1
          %s203 = scalar_lea.sflag [#allocation4], %s202
          %s204 = sand.u32 %s76, 1
          %s205 = smul.addr %s204, 8
          %s206 = scalar_lea.vmem [#allocation7], %s205
          %207 = dma.done %s203, 128
        $region48: #{tpu_custom_call.1} parent=43 // pred_fallthru
          _
      $region44: #{tpu_custom_call.1} parent=5 // pred_fallthru
        _
    $region6: #{tpu_custom_call.1} parent=1 // loop_footer
      %s19 = sadd.s32 1, %s15
    $region7: #{tpu_custom_call.1} parent=1 // loop_footer_branch
      %14 = sbr.rel target = $region3
    $region8: #{tpu_custom_call.1} parent=1 // loop_exit
      _
    %208 = vsyncpa [#allocation3], 1
    %s209 = scalar_lea.sflag [#allocation3], 1
    %210 = vsyncpa %s209, 1
    %211 = vsyncpa [#allocation6], 1
    %212 = vsyncpa [#allocation4], 1
    %s213 = scalar_lea.sflag [#allocation4], 1
    %214 = vsyncpa %s213, 1

// kernel: _mlp_2hl_forward_impl.1
$region0: #{_mlp_2hl_forward_impl.1}
  #allocation0 [shape = 'u32[]', space=smem, size = 0x4, offset = 0x4, fixed_abs, tag = 'smem constant byte address 0x4 - core index']
  #allocation1 [shape = 'u32[144,128]{1,0:T(1,128)}', space=vmem, size = 0x12000, scoped, tag = 'internal scratch']
  %s0 = inlined_call_operand.vmem [shape: f32[16,64], index: 0, kind: input, shape index: {}]
  %s1 = inlined_call_operand.vmem [shape: f32[64,128], index: 1, kind: input, shape index: {}]
  %s2 = inlined_call_operand.vmem [shape: f32[1,128], index: 2, kind: input, shape index: {}]
  %s3 = inlined_call_operand.vmem [shape: f32[128,128], index: 3, kind: input, shape index: {}]
  %s4 = inlined_call_operand.vmem [shape: f32[1,128], index: 4, kind: input, shape index: {}]
  %s5 = inlined_call_operand.vmem [shape: f32[1,128], index: 5, kind: input, shape index: {}]
  %s6 = inlined_call_operand.vmem [shape: f32[1,128], index: 6, kind: input, shape index: {}]
  %s7 = inlined_call_operand.vmem [shape: f32[128,128], index: 7, kind: input, shape index: {}]
  %s8 = inlined_call_operand.vmem [shape: f32[1,128], index: 8, kind: input, shape index: {}]
  %s9 = inlined_call_operand.hbm [shape: f32[16,128], index: 9, kind: output, shape index: {0}]
  %s10 = inlined_call_operand.hbm [shape: f32[16,128], index: 10, kind: output, shape index: {1}]
  %11 = xla_tuple %s9, %s10
  %s12 = sld [smem:[#allocation0]]
  $region77: #{_mlp_2hl_forward_impl.1} parent=0
    _
  %s14 = ssub.s32 1, %s12
  %s15 = scalar_select 0, %s14, %s12
  $region1: #{_mlp_2hl_forward_impl.1} parent=0
    #allocation2 [shape = 'u8[8192]{0}', space=vmem, size = 0x2000, scoped, tag = 'output window, operand 0']
    #allocation3 [shape = 's32[2]{0}', space=sflag, size = 0x8, scoped, tag = 'scoped memory for _mlp_2hl_forward_impl.1']
    #allocation4 [shape = 'u8[8192]{0}', space=vmem, size = 0x2000, scoped, tag = 'output window, operand 1']
    #allocation5 [shape = 's32[2]{0}', space=sflag, size = 0x8, scoped, tag = 'scoped memory for _mlp_2hl_forward_impl.1']
    %16 = vsyncpa [#allocation3], 0
    %s17 = scalar_lea.sflag [#allocation3], 1
    %18 = vsyncpa %s17, 0
    %19 = vsyncpa [#allocation5], 0
    %s20 = scalar_lea.sflag [#allocation5], 1
    %21 = vsyncpa %s20, 0
    loop: start=0, step=1, limit=4
    $region2: #{_mlp_2hl_forward_impl.1} parent=1 // loop_pre_header
      _
    $region3: #{_mlp_2hl_forward_impl.1} parent=1 // loop_header
      %s23 = sphi 0, %s27
      %p24 = scmp.ge.s32.totalorder %s23, 4
      %s33 = sphi 0, %s35
      %s36 = sphi 0, %s33
      %s37 = sphi 0, %s36
      %s53 = sphi 0, %s37
      %s57 = sphi 0, %s57
      %s59 = sphi 0, %s57
      %s60 = sphi 0, %s59
      %s74 = sphi 0, %s60
      %s78 = sphi 0, %s78
      %s80 = sphi 0, %s78
      %s81 = sphi 0, %s80
      %s95 = sphi 0, %s81
      %s99 = sphi 0, %s99
      %s101 = sphi 0, %s99
      %s102 = sphi 0, %s101
      %s116 = sphi 0, %s102
      %s120 = sphi 0, %s120
      %s122 = sphi 0, %s120
      %s123 = sphi 0, %s122
      %s137 = sphi 0, %s123
      %s141 = sphi 0, %s141
      %s143 = sphi 0, %s141
      %s144 = sphi 0, %s143
      %s158 = sphi 0, %s144
      %s162 = sphi 0, %s162
      %s164 = sphi 0, %s162
      %s165 = sphi 0, %s164
      %s179 = sphi 0, %s165
      %s183 = sphi 0, %s183
      %s185 = sphi 0, %s183
      %s186 = sphi 0, %s185
      %s200 = sphi 0, %s186
      %s204 = sphi 0, %s204
      %s206 = sphi 0, %s204
      %s207 = sphi 0, %s206
      %s221 = sphi 0, %s207
      %s227 = sphi 0, %s229
      %s230 = sphi 0, %s227
      %s231 = sphi 0, %s230
      %s247 = sphi 0, %s231
      %s253 = sphi 0, %s255
      %s256 = sphi 0, %s253
      %s257 = sphi 0, %s256
      %s273 = sphi 0, %s257
    $region4: #{_mlp_2hl_forward_impl.1} parent=1 // loop_header_branch
      %26 = sbr.rel (%p24) target = $region8
    $region5: #{_mlp_2hl_forward_impl.1} parent=1 // loop_body
      %s28 = ssub.s32 %s23, 1
      %s29 = ssub.s32 %s23, 2
      %s30 = sadd.s32 %s23, 1
      %s31 = ssub.s32 %s23, %s30
      %p32 = scmp.eq.s32.totalorder %s31, 0
      %s34 = sadd.s32 %s33, 1
      %s35 = scalar_select %p32, %s33, %s34
      %p38 = pneg %p32
      %p39 = scmp.eq.s32.totalorder %s23, 1
      %p40 = por %p38, %p39
      %p41 = scmp.ne.s32.totalorder %s33, %s36
      %p42 = scmp.eq.s32.totalorder %s23, 0
      %p43 = por %p41, %p42
      %p44 = scmp.ne.s32.totalorder %s33, %s36
      %p45 = scmp.eq.s32.totalorder %s28, 1
      %p46 = por %p44, %p45
      %p47 = scmp.ne.s32.totalorder %s36, %s37
      %p48 = scmp.eq.s32.totalorder %s28, 0
      %p49 = por %p47, %p48
      %p50 = scmp.ne.s32.totalorder %s36, %s37
      %p51 = scmp.eq.s32.totalorder %s29, 1
      %p52 = por %p50, %p51
      %p54 = scmp.ne.s32.totalorder %s37, %s53
      %p55 = scmp.eq.s32.totalorder %s29, 0
      %p56 = por %p54, %p55
      %s58 = sadd.s32 %s57, 1
      %p61 = scmp.eq.s32.totalorder %s23, 1
      %p62 = scmp.ne.s32.totalorder %s57, %s59
      %p63 = scmp.eq.s32.totalorder %s23, 0
      %p64 = por %p62, %p63
      %p65 = scmp.ne.s32.totalorder %s57, %s59
      %p66 = scmp.eq.s32.totalorder %s28, 1
      %p67 = por %p65, %p66
      %p68 = scmp.ne.s32.totalorder %s59, %s60
      %p69 = scmp.eq.s32.totalorder %s28, 0
      %p70 = por %p68, %p69
      %p71 = scmp.ne.s32.totalorder %s59, %s60
      %p72 = scmp.eq.s32.totalorder %s29, 1
      %p73 = por %p71, %p72
      %p75 = scmp.ne.s32.totalorder %s60, %s74
      %p76 = scmp.eq.s32.totalorder %s29, 0
      %p77 = por %p75, %p76
      %s79 = sadd.s32 %s78, 1
      %p82 = scmp.eq.s32.totalorder %s23, 1
      %p83 = scmp.ne.s32.totalorder %s78, %s80
      %p84 = scmp.eq.s32.totalorder %s23, 0
      %p85 = por %p83, %p84
      %p86 = scmp.ne.s32.totalorder %s78, %s80
      %p87 = scmp.eq.s32.totalorder %s28, 1
      %p88 = por %p86, %p87
      %p89 = scmp.ne.s32.totalorder %s80, %s81
      %p90 = scmp.eq.s32.totalorder %s28, 0
      %p91 = por %p89, %p90
      %p92 = scmp.ne.s32.totalorder %s80, %s81
      %p93 = scmp.eq.s32.totalorder %s29, 1
      %p94 = por %p92, %p93
      %p96 = scmp.ne.s32.totalorder %s81, %s95
      %p97 = scmp.eq.s32.totalorder %s29, 0
      %p98 = por %p96, %p97
      %s100 = sadd.s32 %s99, 1
      %p103 = scmp.eq.s32.totalorder %s23, 1
      %p104 = scmp.ne.s32.totalorder %s99, %s101
      %p105 = scmp.eq.s32.totalorder %s23, 0
      %p106 = por %p104, %p105
      %p107 = scmp.ne.s32.totalorder %s99, %s101
      %p108 = scmp.eq.s32.totalorder %s28, 1
      %p109 = por %p107, %p108
      %p110 = scmp.ne.s32.totalorder %s101, %s102
      %p111 = scmp.eq.s32.totalorder %s28, 0
      %p112 = por %p110, %p111
      %p113 = scmp.ne.s32.totalorder %s101, %s102
      %p114 = scmp.eq.s32.totalorder %s29, 1
      %p115 = por %p113, %p114
      %p117 = scmp.ne.s32.totalorder %s102, %s116
      %p118 = scmp.eq.s32.totalorder %s29, 0
      %p119 = por %p117, %p118
      %s121 = sadd.s32 %s120, 1
      %p124 = scmp.eq.s32.totalorder %s23, 1
      %p125 = scmp.ne.s32.totalorder %s120, %s122
      %p126 = scmp.eq.s32.totalorder %s23, 0
      %p127 = por %p125, %p126
      %p128 = scmp.ne.s32.totalorder %s120, %s122
      %p129 = scmp.eq.s32.totalorder %s28, 1
      %p130 = por %p128, %p129
      %p131 = scmp.ne.s32.totalorder %s122, %s123
      %p132 = scmp.eq.s32.totalorder %s28, 0
      %p133 = por %p131, %p132
      %p134 = scmp.ne.s32.totalorder %s122, %s123
      %p135 = scmp.eq.s32.totalorder %s29, 1
      %p136 = por %p134, %p135
      %p138 = scmp.ne.s32.totalorder %s123, %s137
      %p139 = scmp.eq.s32.totalorder %s29, 0
      %p140 = por %p138, %p139
      %s142 = sadd.s32 %s141, 1
      %p145 = scmp.eq.s32.totalorder %s23, 1
      %p146 = scmp.ne.s32.totalorder %s141, %s143
      %p147 = scmp.eq.s32.totalorder %s23, 0
      %p148 = por %p146, %p147
      %p149 = scmp.ne.s32.totalorder %s141, %s143
      %p150 = scmp.eq.s32.totalorder %s28, 1
      %p151 = por %p149, %p150
      %p152 = scmp.ne.s32.totalorder %s143, %s144
      %p153 = scmp.eq.s32.totalorder %s28, 0
      %p154 = por %p152, %p153
      %p155 = scmp.ne.s32.totalorder %s143, %s144
      %p156 = scmp.eq.s32.totalorder %s29, 1
      %p157 = por %p155, %p156
      %p159 = scmp.ne.s32.totalorder %s144, %s158
      %p160 = scmp.eq.s32.totalorder %s29, 0
      %p161 = por %p159, %p160
      %s163 = sadd.s32 %s162, 1
      %p166 = scmp.eq.s32.totalorder %s23, 1
      %p167 = scmp.ne.s32.totalorder %s162, %s164
      %p168 = scmp.eq.s32.totalorder %s23, 0
      %p169 = por %p167, %p168
      %p170 = scmp.ne.s32.totalorder %s162, %s164
      %p171 = scmp.eq.s32.totalorder %s28, 1
      %p172 = por %p170, %p171
      %p173 = scmp.ne.s32.totalorder %s164, %s165
      %p174 = scmp.eq.s32.totalorder %s28, 0
      %p175 = por %p173, %p174
      %p176 = scmp.ne.s32.totalorder %s164, %s165
      %p177 = scmp.eq.s32.totalorder %s29, 1
      %p178 = por %p176, %p177
      %p180 = scmp.ne.s32.totalorder %s165, %s179
      %p181 = scmp.eq.s32.totalorder %s29, 0
      %p182 = por %p180, %p181
      %s184 = sadd.s32 %s183, 1
      %p187 = scmp.eq.s32.totalorder %s23, 1
      %p188 = scmp.ne.s32.totalorder %s183, %s185
      %p189 = scmp.eq.s32.totalorder %s23, 0
      %p190 = por %p188, %p189
      %p191 = scmp.ne.s32.totalorder %s183, %s185
      %p192 = scmp.eq.s32.totalorder %s28, 1
      %p193 = por %p191, %p192
      %p194 = scmp.ne.s32.totalorder %s185, %s186
      %p195 = scmp.eq.s32.totalorder %s28, 0
      %p196 = por %p194, %p195
      %p197 = scmp.ne.s32.totalorder %s185, %s186
      %p198 = scmp.eq.s32.totalorder %s29, 1
      %p199 = por %p197, %p198
      %p201 = scmp.ne.s32.totalorder %s186, %s200
      %p202 = scmp.eq.s32.totalorder %s29, 0
      %p203 = por %p201, %p202
      %s205 = sadd.s32 %s204, 1
      %p208 = scmp.eq.s32.totalorder %s23, 1
      %p209 = scmp.ne.s32.totalorder %s204, %s206
      %p210 = scmp.eq.s32.totalorder %s23, 0
      %p211 = por %p209, %p210
      %p212 = scmp.ne.s32.totalorder %s204, %s206
      %p213 = scmp.eq.s32.totalorder %s28, 1
      %p214 = por %p212, %p213
      %p215 = scmp.ne.s32.totalorder %s206, %s207
      %p216 = scmp.eq.s32.totalorder %s28, 0
      %p217 = por %p215, %p216
      %p218 = scmp.ne.s32.totalorder %s206, %s207
      %p219 = scmp.eq.s32.totalorder %s29, 1
      %p220 = por %p218, %p219
      %p222 = scmp.ne.s32.totalorder %s207, %s221
      %p223 = scmp.eq.s32.totalorder %s29, 0
      %p224 = por %p222, %p223
      %s225 = ssub.s32 %s23, %s30
      %p226 = scmp.eq.s32.totalorder %s225, 0
      %s228 = sadd.s32 %s227, 1
      %s229 = scalar_select %p226, %s227, %s228
      %p232 = pneg %p226
      %p233 = scmp.eq.s32.totalorder %s23, 1
      %p234 = por %p232, %p233
      %p235 = scmp.ne.s32.totalorder %s227, %s230
      %p236 = scmp.eq.s32.totalorder %s23, 0
      %p237 = por %p235, %p236
      %p238 = scmp.ne.s32.totalorder %s227, %s230
      %p239 = scmp.eq.s32.totalorder %s28, 1
      %p240 = por %p238, %p239
      %p241 = scmp.ne.s32.totalorder %s230, %s231
      %p242 = scmp.eq.s32.totalorder %s28, 0
      %p243 = por %p241, %p242
      %p244 = scmp.ne.s32.totalorder %s230, %s231
      %p245 = scmp.eq.s32.totalorder %s29, 1
      %p246 = por %p244, %p245
      %p248 = scmp.ne.s32.totalorder %s231, %s247
      %p249 = scmp.eq.s32.totalorder %s29, 0
      %p250 = por %p248, %p249
      %s251 = ssub.s32 %s23, %s30
      %p252 = scmp.eq.s32.totalorder %s251, 0
      %s254 = sadd.s32 %s253, 1
      %s255 = scalar_select %p252, %s253, %s254
      %p258 = pneg %p252
      %p259 = scmp.eq.s32.totalorder %s23, 1
      %p260 = por %p258, %p259
      %p261 = scmp.ne.s32.totalorder %s253, %s256
      %p262 = scmp.eq.s32.totalorder %s23, 0
      %p263 = por %p261, %p262
      %p264 = scmp.ne.s32.totalorder %s253, %s256
      %p265 = scmp.eq.s32.totalorder %s28, 1
      %p266 = por %p264, %p265
      %p267 = scmp.ne.s32.totalorder %s256, %s257
      %p268 = scmp.eq.s32.totalorder %s28, 0
      %p269 = por %p267, %p268
      %p270 = scmp.ne.s32.totalorder %s256, %s257
      %p271 = scmp.eq.s32.totalorder %s29, 1
      %p272 = por %p270, %p271
      %p274 = scmp.ne.s32.totalorder %s257, %s273
      %p275 = scmp.eq.s32.totalorder %s29, 0
      %p276 = por %p274, %p275
      %p277 = scmp.le.s32.totalorder 1, %s23
      %p278 = scmp.lt.s32.totalorder %s23, 3
      %p279 = pnand %p277, %p278
      %p280 = pneg %p279
      // Predicated region
      $region9: #{_mlp_2hl_forward_impl.1} parent=5 // pred_check
        _
      $region10: #{_mlp_2hl_forward_impl.1} parent=5 // pred_check_branch
        %282 = sbr.rel (%p279) target = $region12
      $region11: #{_mlp_2hl_forward_impl.1} parent=5 // pred_region
        %s283 = ssub.s32 %s23, 1
        // Predicated region
        $region13: #{_mlp_2hl_forward_impl.1} parent=11 // pred_check
          %p284 = pneg %p70
        $region14: #{_mlp_2hl_forward_impl.1} parent=11 // pred_check_branch
          %286 = sbr.rel (%p284) target = $region16
        $region15: #{_mlp_2hl_forward_impl.1} parent=11 // pred_region
          _
        $region16: #{_mlp_2hl_forward_impl.1} parent=11 // pred_fallthru
          _
        // Predicated region
        $region17: #{_mlp_2hl_forward_impl.1} parent=11 // pred_check
          %p287 = pneg %p91
        $region18: #{_mlp_2hl_forward_impl.1} parent=11 // pred_check_branch
          %289 = sbr.rel (%p287) target = $region20
        $region19: #{_mlp_2hl_forward_impl.1} parent=11 // pred_region
          _
        $region20: #{_mlp_2hl_forward_impl.1} parent=11 // pred_fallthru
          _
        // Predicated region
        $region21: #{_mlp_2hl_forward_impl.1} parent=11 // pred_check
          %p290 = pneg %p112
        $region22: #{_mlp_2hl_forward_impl.1} parent=11 // pred_check_branch
          %292 = sbr.rel (%p290) target = $region24
        $region23: #{_mlp_2hl_forward_impl.1} parent=11 // pred_region
          _
        $region24: #{_mlp_2hl_forward_impl.1} parent=11 // pred_fallthru
          _
        // Predicated region
        $region25: #{_mlp_2hl_forward_impl.1} parent=11 // pred_check
          %p293 = pneg %p133
        $region26: #{_mlp_2hl_forward_impl.1} parent=11 // pred_check_branch
          %295 = sbr.rel (%p293) target = $region28
        $region27: #{_mlp_2hl_forward_impl.1} parent=11 // pred_region
          _
        $region28: #{_mlp_2hl_forward_impl.1} parent=11 // pred_fallthru
          _
        // Predicated region
        $region29: #{_mlp_2hl_forward_impl.1} parent=11 // pred_check
          %p296 = pneg %p154
        $region30: #{_mlp_2hl_forward_impl.1} parent=11 // pred_check_branch
          %298 = sbr.rel (%p296) target = $region32
        $region31: #{_mlp_2hl_forward_impl.1} parent=11 // pred_region
          _
        $region32: #{_mlp_2hl_forward_impl.1} parent=11 // pred_fallthru
          _
        // Predicated region
        $region33: #{_mlp_2hl_forward_impl.1} parent=11 // pred_check
          %p299 = pneg %p175
        $region34: #{_mlp_2hl_forward_impl.1} parent=11 // pred_check_branch
          %301 = sbr.rel (%p299) target = $region36
        $region35: #{_mlp_2hl_forward_impl.1} parent=11 // pred_region
          _
        $region36: #{_mlp_2hl_forward_impl.1} parent=11 // pred_fallthru
          _
        // Predicated region
        $region37: #{_mlp_2hl_forward_impl.1} parent=11 // pred_check
          %p302 = pneg %p196
        $region38: #{_mlp_2hl_forward_impl.1} parent=11 // pred_check_branch
          %304 = sbr.rel (%p302) target = $region40
        $region39: #{_mlp_2hl_forward_impl.1} parent=11 // pred_region
          _
        $region40: #{_mlp_2hl_forward_impl.1} parent=11 // pred_fallthru
          _
        // Predicated region
        $region41: #{_mlp_2hl_forward_impl.1} parent=11 // pred_check
          %p305 = pneg %p217
        $region42: #{_mlp_2hl_forward_impl.1} parent=11 // pred_check_branch
          %307 = sbr.rel (%p305) target = $region44
        $region43: #{_mlp_2hl_forward_impl.1} parent=11 // pred_region
          _
        $region44: #{_mlp_2hl_forward_impl.1} parent=11 // pred_fallthru
          _
      $region12: #{_mlp_2hl_forward_impl.1} parent=5 // pred_fallthru
        _
      %p308 = scmp.lt.s32.totalorder %s23, 2
      // Predicated region
      $region45: #{_mlp_2hl_forward_impl.1} parent=5 // pred_check
        %p309 = pneg %p308
      $region46: #{_mlp_2hl_forward_impl.1} parent=5 // pred_check_branch
        %311 = sbr.rel (%p309) target = $region48
      $region47: #{_mlp_2hl_forward_impl.1} parent=5 // pred_region
        // Predicated region
        $region49: #{_mlp_2hl_forward_impl.1} parent=47 // pred_check
          %p312 = pneg %p43
        $region50: #{_mlp_2hl_forward_impl.1} parent=47 // pred_check_branch
          %314 = sbr.rel (%p312) target = $region52
        $region51: #{_mlp_2hl_forward_impl.1} parent=47 // pred_region
          %p315 = scmp.lt.s32.totalorder %s23, 1
          %s316 = scalar_select %p315, %s23, 1
          %s317 = smul.addr %s316, 8
          %s318 = scalar_lea.vmem %s0, %s317
        $region52: #{_mlp_2hl_forward_impl.1} parent=47 // pred_fallthru
          _
      $region48: #{_mlp_2hl_forward_impl.1} parent=5 // pred_fallthru
        _
      %p319 = scmp.le.s32.totalorder 1, %s23
      %p320 = scmp.lt.s32.totalorder %s23, 3
      %p321 = pnand %p319, %p320
      %p322 = pneg %p321
      // Predicated region
      $region53: #{_mlp_2hl_forward_impl.1} parent=5 // pred_check
        _
      $region54: #{_mlp_2hl_forward_impl.1} parent=5 // pred_check_branch
        %324 = sbr.rel (%p321) target = $region56
      $region55: #{_mlp_2hl_forward_impl.1} parent=5 // pred_region
        %s325 = ssub.s32 %s23, 1
        %p326 = scmp.lt.s32.totalorder %s28, 1
        %s327 = scalar_select %p326, %s28, 1
        %s328 = smul.addr %s327, 8
        %s329 = scalar_lea.vmem %s0, %s328
        %p330 = pneg %p49
        %p331 = pneg %p46
        %p332 = pneg %p70
        %p333 = pneg %p67
        %p334 = pneg %p91
        %p335 = pneg %p88
        %p336 = pneg %p112
        %p337 = pneg %p109
        %p338 = pneg %p133
        %p339 = pneg %p130
        %p340 = pneg %p154
        %p341 = pneg %p151
        %p342 = pneg %p175
        %p343 = pneg %p172
        %p344 = pneg %p196
        %p345 = pneg %p193
        %p346 = pneg %p217
        %p347 = pneg %p214
        %p348 = pneg %p243
        %p349 = pneg %p240
        %s350 = sand.u32 %s230, 1
        %s351 = scalar_lea.sflag [#allocation3], %s350
        %s352 = sand.u32 %s230, 1
        %s353 = smul.addr %s352, 8
        %s354 = scalar_lea.vmem [#allocation2], %s353
        %p355 = pneg %p269
        %p356 = pneg %p266
        %s357 = sand.u32 %s256, 1
        %s358 = scalar_lea.sflag [#allocation5], %s357
        %s359 = sand.u32 %s256, 1
        %s360 = smul.addr %s359, 8
        %s361 = scalar_lea.vmem [#allocation4], %s360
        %p362 = scmp.lt.s32.totalorder %s28, 1
        %s363 = scalar_select %p362, %s28, 1
        %s364 = smul.addr %s363, 8
        %s365 = scalar_lea.vmem %s0, %s364
        %v366 = vld [vmem:[%s365] sm:$0xff]
        %v367 = vld [vmem:[%s1] sm:$0xff]
        %v368 = vld [vmem:[%s1 + $0x8] sm:$0xff]
        %v369 = vld [vmem:[%s1 + $0x10] sm:$0xff]
        %v370 = vld [vmem:[%s1 + $0x18] sm:$0xff]
        %v371 = vld [vmem:[%s1 + $0x20] sm:$0xff]
        %v372 = vld [vmem:[%s1 + $0x28] sm:$0xff]
        %v373 = vld [vmem:[%s1 + $0x30] sm:$0xff]
        %v374 = vld [vmem:[%s1 + $0x38] sm:$0xff]
        %v375 = vld [vmem:[%s2] sm:$0x1]
        %v377 = vlaneseq
        %v378 = vshrl.u32 %v377, 7
        %v379 = vsub.s32 0, %v378
        %v380 = vrot.slane %v375, %v379
        %vm382 = vcmask 523264
        %v384 = vsel %vm382, %v366, 0
        %386 = vmatprep.subr.mxu0 0.0
        %387 = vmatpush1.msra.mxu0 %v367
        %388 = vmatprep.subr.mxu0 0.0
        %389 = vmatpush1.msra.mxu0 %v368
        %390 = vmatprep.subr.mxu0 0.0
        %391 = vmatpush1.msra.mxu0 %v369
        %392 = vmatprep.subr.mxu0 0.0
        %393 = vmatpush1.msra.mxu0 %v370
        %394 = vmatprep.subr.mxu0 0.0
        %395 = vmatpush1.msra.mxu0 %v371
        %396 = vmatprep.subr.mxu0 0.0
        %397 = vmatpush1.msra.mxu0 %v372
        %398 = vmatprep.subr.mxu0 0.0
        %399 = vmatpush1.msra.mxu0 %v373
        %400 = vmatprep.subr.mxu0 0.0
        %401 = vmatpush1.msra.mxu0 %v374
        %402 = vmatprep.subr.mxu0 0.0
        %403 = vmatpush1.msra.mxu0 0.0
        %404 = vmatprep.subr.mxu0 0.0
        %405 = vmatpush1.msra.mxu0 0.0
        %406 = vmatprep.subr.mxu0 0.0
        %407 = vmatpush1.msra.mxu0 0.0
        %408 = vmatprep.subr.mxu0 0.0
        %409 = vmatpush1.msra.mxu0 0.0
        %410 = vmatprep.subr.mxu0 0.0
        %411 = vmatpush1.msra.mxu0 0.0
        %412 = vmatprep.subr.mxu0 0.0
        %413 = vmatpush1.msra.mxu0 0.0
        %414 = vmatprep.subr.mxu0 0.0
        %415 = vmatpush1.msra.mxu0 0.0
        %416 = vmatprep.subr.mxu0 0.0
        %417 = vmatpush1.msra.mxu0 0.0
        %418 = vmatprep.subr.mxu0 0.0
        %419 = vmatpush1.msra.mxu0 0.0
        %420 = vmatprep.subr.mxu0 0.0
        %421 = vmatpush1.msra.mxu0 0.0
        %422 = vmatprep.subr.mxu0 0.0
        %423 = vmatpush1.msra.mxu0 0.0
        %424 = vmatprep.subr.mxu0 0.0
        %425 = vmatpush1.msra.mxu0 0.0
        %426 = vmatprep.subr.mxu0 0.0
        %427 = vmatpush1.msra.mxu0 0.0
        %428 = vmatprep.subr.mxu0 0.0
        %429 = vmatpush1.msra.mxu0 0.0
        %430 = vmatprep.subr.mxu0 0.0
        %431 = vmatpush1.msra.mxu0 0.0
        %432 = vmatprep.subr.mxu0 0.0
        %433 = vmatpush1.msra.mxu0 0.0
        %434 = vmatprep.subr.mxu0 0.0
        %435 = vmatpush1.msra.mxu0 0.0
        %436 = vmatprep.subr.mxu0 0.0
        %437 = vmatpush1.msra.mxu0 0.0
        %438 = vmatprep.subr.mxu0 0.0
        %439 = vmatpush1.msra.mxu0 0.0
        %440 = vmatprep.subr.mxu0 0.0
        %441 = vmatpush1.msra.mxu0 0.0
        %442 = vmatprep.subr.mxu0 0.0
        %443 = vmatpush1.msra.mxu0 0.0
        %444 = vmatprep.subr.mxu0 0.0
        %445 = vmatpush1.msra.mxu0 0.0
        %446 = vmatprep.subr.mxu0 0.0
        %447 = vmatpush1.msra.mxu0 0.0
        %448 = vmatprep.subr.mxu0 0.0
        %449 = vmatpush1.msra.mxu0 0.0
        %450 = vmatprep.mubr.f32.mxu0 0.0
        %451 = vmatmul.mubr.f32.gmra.mrb[0].mxu0 %v384
        %v452 = vpop.f32.mrb[0].mxu0
        %v453 = vadd.f32 %v380, %v452
        %v454 = vpop.f32.mrb[0].mxu0
        %455 = vdwg.mxu0
        %vm456 = vcmp.gt.f32.partialorder %v453, 0.0
        %v457 = vmul.f32 %v453, 0.01
        %v458 = vsel %vm456, %v453, %v457
        %v459 = vld [vmem:[%s3] sm:$0xff]
        %v460 = vld [vmem:[%s3 + $0x8] sm:$0xff]
        %v461 = vld [vmem:[%s3 + $0x10] sm:$0xff]
        %v462 = vld [vmem:[%s3 + $0x18] sm:$0xff]
        %v463 = vld [vmem:[%s3 + $0x20] sm:$0xff]
        %v464 = vld [vmem:[%s3 + $0x28] sm:$0xff]
        %v465 = vld [vmem:[%s3 + $0x30] sm:$0xff]
        %v466 = vld [vmem:[%s3 + $0x38] sm:$0xff]
        %v467 = vld [vmem:[%s3 + $0x40] sm:$0xff]
        %v468 = vld [vmem:[%s3 + $0x48] sm:$0xff]
        %v469 = vld [vmem:[%s3 + $0x50] sm:$0xff]
        %v470 = vld [vmem:[%s3 + $0x58] sm:$0xff]
        %v471 = vld [vmem:[%s3 + $0x60] sm:$0xff]
        %v472 = vld [vmem:[%s3 + $0x68] sm:$0xff]
        %v473 = vld [vmem:[%s3 + $0x70] sm:$0xff]
        %v474 = vld [vmem:[%s3 + $0x78] sm:$0xff]
        %v475 = vld [vmem:[%s4] sm:$0x1]
        %v477 = vlaneseq
        %v478 = vshrl.u32 %v477, 7
        %v479 = vsub.s32 0, %v478
        %v480 = vrot.slane %v475, %v479
        %482 = vmatprep.subr.mxu0 0.0
        %483 = vmatpush1.msra.mxu0 %v459
        %484 = vmatprep.subr.mxu0 0.0
        %485 = vmatpush1.msra.mxu0 %v460
        %486 = vmatprep.subr.mxu0 0.0
        %487 = vmatpush1.msra.mxu0 %v461
        %488 = vmatprep.subr.mxu0 0.0
        %489 = vmatpush1.msra.mxu0 %v462
        %490 = vmatprep.subr.mxu0 0.0
        %491 = vmatpush1.msra.mxu0 %v463
        %492 = vmatprep.subr.mxu0 0.0
        %493 = vmatpush1.msra.mxu0 %v464
        %494 = vmatprep.subr.mxu0 0.0
        %495 = vmatpush1.msra.mxu0 %v465
        %496 = vmatprep.subr.mxu0 0.0
        %497 = vmatpush1.msra.mxu0 %v466
        %498 = vmatprep.subr.mxu0 0.0
        %499 = vmatpush1.msra.mxu0 %v467
        %500 = vmatprep.subr.mxu0 0.0
        %501 = vmatpush1.msra.mxu0 %v468
        %502 = vmatprep.subr.mxu0 0.0
        %503 = vmatpush1.msra.mxu0 %v469
        %504 = vmatprep.subr.mxu0 0.0
        %505 = vmatpush1.msra.mxu0 %v470
        %506 = vmatprep.subr.mxu0 0.0
        %507 = vmatpush1.msra.mxu0 %v471
        %508 = vmatprep.subr.mxu0 0.0
        %509 = vmatpush1.msra.mxu0 %v472
        %510 = vmatprep.subr.mxu0 0.0
        %511 = vmatpush1.msra.mxu0 %v473
        %512 = vmatprep.subr.mxu0 0.0
        %513 = vmatpush1.msra.mxu0 %v474
        %514 = vmatprep.subr.mxu0 0.0
        %515 = vmatpush1.msra.mxu0 0.0
        %516 = vmatprep.subr.mxu0 0.0
        %517 = vmatpush1.msra.mxu0 0.0
        %518 = vmatprep.subr.mxu0 0.0
        %519 = vmatpush1.msra.mxu0 0.0
        %520 = vmatprep.subr.mxu0 0.0
        %521 = vmatpush1.msra.mxu0 0.0
        %522 = vmatprep.subr.mxu0 0.0
        %523 = vmatpush1.msra.mxu0 0.0
        %524 = vmatprep.subr.mxu0 0.0
        %525 = vmatpush1.msra.mxu0 0.0
        %526 = vmatprep.subr.mxu0 0.0
        %527 = vmatpush1.msra.mxu0 0.0
        %528 = vmatprep.subr.mxu0 0.0
        %529 = vmatpush1.msra.mxu0 0.0
        %530 = vmatprep.subr.mxu0 0.0
        %531 = vmatpush1.msra.mxu0 0.0
        %532 = vmatprep.subr.mxu0 0.0
        %533 = vmatpush1.msra.mxu0 0.0
        %534 = vmatprep.subr.mxu0 0.0
        %535 = vmatpush1.msra.mxu0 0.0
        %536 = vmatprep.subr.mxu0 0.0
        %537 = vmatpush1.msra.mxu0 0.0
        %538 = vmatprep.subr.mxu0 0.0
        %539 = vmatpush1.msra.mxu0 0.0
        %540 = vmatprep.subr.mxu0 0.0
        %541 = vmatpush1.msra.mxu0 0.0
        %542 = vmatprep.subr.mxu0 0.0
        %543 = vmatpush1.msra.mxu0 0.0
        %544 = vmatprep.subr.mxu0 0.0
        %545 = vmatpush1.msra.mxu0 0.0
        %546 = vmatprep.mubr.f32.mxu0 0.0
        %547 = vmatmul.mubr.f32.gmra.mrb[0].mxu0 %v458
        %v548 = vpop.f32.mrb[0].mxu0
        %v549 = vadd.f32 %v480, %v548
        %v550 = vpop.f32.mrb[0].mxu0
        %551 = vdwg.mxu0
        %vm552 = vcmp.gt.f32.partialorder %v549, 0.0
        %v553 = vmul.f32 %v549, 0.01
        %v554 = vsel %vm552, %v549, %v553
        %v555 = vld [vmem:[%s7] sm:$0xff]
        %v556 = vld [vmem:[%s7 + $0x8] sm:$0xff]
        %v557 = vld [vmem:[%s7 + $0x10] sm:$0xff]
        %v558 = vld [vmem:[%s7 + $0x18] sm:$0xff]
        %v559 = vld [vmem:[%s7 + $0x20] sm:$0xff]
        %v560 = vld [vmem:[%s7 + $0x28] sm:$0xff]
        %v561 = vld [vmem:[%s7 + $0x30] sm:$0xff]
        %v562 = vld [vmem:[%s7 + $0x38] sm:$0xff]
        %v563 = vld [vmem:[%s7 + $0x40] sm:$0xff]
        %v564 = vld [vmem:[%s7 + $0x48] sm:$0xff]
        %v565 = vld [vmem:[%s7 + $0x50] sm:$0xff]
        %v566 = vld [vmem:[%s7 + $0x58] sm:$0xff]
        %v567 = vld [vmem:[%s7 + $0x60] sm:$0xff]
        %v568 = vld [vmem:[%s7 + $0x68] sm:$0xff]
        %v569 = vld [vmem:[%s7 + $0x70] sm:$0xff]
        %v570 = vld [vmem:[%s7 + $0x78] sm:$0xff]
        %v571 = vld [vmem:[%s8] sm:$0x1]
        %v573 = vlaneseq
        %v574 = vshrl.u32 %v573, 7
        %v575 = vsub.s32 0, %v574
        %v576 = vrot.slane %v571, %v575
        %578 = vmatprep.subr.mxu0 0.0
        %579 = vmatpush1.msra.mxu0 %v555
        %580 = vmatprep.subr.mxu0 0.0
        %581 = vmatpush1.msra.mxu0 %v556
        %582 = vmatprep.subr.mxu0 0.0
        %583 = vmatpush1.msra.mxu0 %v557
        %584 = vmatprep.subr.mxu0 0.0
        %585 = vmatpush1.msra.mxu0 %v558
        %586 = vmatprep.subr.mxu0 0.0
        %587 = vmatpush1.msra.mxu0 %v559
        %588 = vmatprep.subr.mxu0 0.0
        %589 = vmatpush1.msra.mxu0 %v560
        %590 = vmatprep.subr.mxu0 0.0
        %591 = vmatpush1.msra.mxu0 %v561
        %592 = vmatprep.subr.mxu0 0.0
        %593 = vmatpush1.msra.mxu0 %v562
        %594 = vmatprep.subr.mxu0 0.0
        %595 = vmatpush1.msra.mxu0 %v563
        %596 = vmatprep.subr.mxu0 0.0
        %597 = vmatpush1.msra.mxu0 %v564
        %598 = vmatprep.subr.mxu0 0.0
        %599 = vmatpush1.msra.mxu0 %v565
        %600 = vmatprep.subr.mxu0 0.0
        %601 = vmatpush1.msra.mxu0 %v566
        %602 = vmatprep.subr.mxu0 0.0
        %603 = vmatpush1.msra.mxu0 %v567
        %604 = vmatprep.subr.mxu0 0.0
        %605 = vmatpush1.msra.mxu0 %v568
        %606 = vmatprep.subr.mxu0 0.0
        %607 = vmatpush1.msra.mxu0 %v569
        %608 = vmatprep.subr.mxu0 0.0
        %609 = vmatpush1.msra.mxu0 %v570
        %610 = vmatprep.subr.mxu0 0.0
        %611 = vmatpush1.msra.mxu0 0.0
        %612 = vmatprep.subr.mxu0 0.0
        %613 = vmatpush1.msra.mxu0 0.0
        %614 = vmatprep.subr.mxu0 0.0
        %615 = vmatpush1.msra.mxu0 0.0
        %616 = vmatprep.subr.mxu0 0.0
        %617 = vmatpush1.msra.mxu0 0.0
        %618 = vmatprep.subr.mxu0 0.0
        %619 = vmatpush1.msra.mxu0 0.0
        %620 = vmatprep.subr.mxu0 0.0
        %621 = vmatpush1.msra.mxu0 0.0
        %622 = vmatprep.subr.mxu0 0.0
        %623 = vmatpush1.msra.mxu0 0.0
        %624 = vmatprep.subr.mxu0 0.0
        %625 = vmatpush1.msra.mxu0 0.0
        %626 = vmatprep.subr.mxu0 0.0
        %627 = vmatpush1.msra.mxu0 0.0
        %628 = vmatprep.subr.mxu0 0.0
        %629 = vmatpush1.msra.mxu0 0.0
        %630 = vmatprep.subr.mxu0 0.0
        %631 = vmatpush1.msra.mxu0 0.0
        %632 = vmatprep.subr.mxu0 0.0
        %633 = vmatpush1.msra.mxu0 0.0
        %634 = vmatprep.subr.mxu0 0.0
        %635 = vmatpush1.msra.mxu0 0.0
        %636 = vmatprep.subr.mxu0 0.0
        %637 = vmatpush1.msra.mxu0 0.0
        %638 = vmatprep.subr.mxu0 0.0
        %639 = vmatpush1.msra.mxu0 0.0
        %640 = vmatprep.subr.mxu0 0.0
        %641 = vmatpush1.msra.mxu0 0.0
        %642 = vmatprep.mubr.f32.mxu0 0.0
        %643 = vmatmul.mubr.f32.gmra.mrb[0].mxu0 %v554
        %v644 = vpop.f32.mrb[0].mxu0
        %v645 = vadd.f32 %v576, %v644
        %v646 = vpop.f32.mrb[0].mxu0
        %647 = vdwg.mxu0
        %648 = vst [vmem:[%s361] sm:$0xff] %v645
        %v649 = vld [vmem:[%s5] sm:$0x1]
        %v651 = vlaneseq
        %v652 = vshrl.u32 %v651, 7
        %v653 = vsub.s32 0, %v652
        %v654 = vrot.slane %v649, %v653
        %v656 = vmul.f32 %v554, %v654
        %v657 = vld [vmem:[%s6] sm:$0x1]
        %v659 = vlaneseq
        %v660 = vshrl.u32 %v659, 7
        %v661 = vsub.s32 0, %v660
        %v662 = vrot.slane %v657, %v661
        %v664 = vadd.f32 %v656, %v662
        %665 = vst [vmem:[%s354] sm:$0xff] %v664
        %s666 = sand.u32 %s230, 1
        %s667 = scalar_lea.sflag [#allocation3], %s666
        %s668 = sand.u32 %s230, 1
        %s669 = smul.addr %s668, 8
        %s670 = scalar_lea.vmem [#allocation2], %s669
        %s671 = sand.u32 %s256, 1
        %s672 = scalar_lea.sflag [#allocation5], %s671
        %s673 = sand.u32 %s256, 1
        %s674 = smul.addr %s673, 8
        %s675 = scalar_lea.vmem [#allocation4], %s674
        // Predicated region
        $region57: #{_mlp_2hl_forward_impl.1} parent=55 // pred_check
          %p676 = pneg %p240
        $region58: #{_mlp_2hl_forward_impl.1} parent=55 // pred_check_branch
          %678 = sbr.rel (%p676) target = $region60
        $region59: #{_mlp_2hl_forward_impl.1} parent=55 // pred_region
          %s680 = ssub.s32 128, 128
          %681 = vsyncadd %s667, %s680
          %s682 = smul.addr %s28, 128
          %s683 = scalar_lea.hbm %s9, %s682
          %s685 = sshll.u32 %s670, 4
          %s686 = int_to_ptr.vmem [resolvable:$true] %s685
          %688 = dma.vmem_to_hbm [thread:$0]  %s686, 128, %s683, %s667
        $region60: #{_mlp_2hl_forward_impl.1} parent=55 // pred_fallthru
          _
        // Predicated region
        $region61: #{_mlp_2hl_forward_impl.1} parent=55 // pred_check
          %p689 = pneg %p266
        $region62: #{_mlp_2hl_forward_impl.1} parent=55 // pred_check_branch
          %691 = sbr.rel (%p689) target = $region64
        $region63: #{_mlp_2hl_forward_impl.1} parent=55 // pred_region
          %s693 = ssub.s32 128, 128
          %694 = vsyncadd %s672, %s693
          %s695 = smul.addr %s28, 128
          %s696 = scalar_lea.hbm %s10, %s695
          %s698 = sshll.u32 %s675, 4
          %s699 = int_to_ptr.vmem [resolvable:$true] %s698
          %701 = dma.vmem_to_hbm [thread:$0]  %s699, 128, %s696, %s672
        $region64: #{_mlp_2hl_forward_impl.1} parent=55 // pred_fallthru
          _
      $region56: #{_mlp_2hl_forward_impl.1} parent=5 // pred_fallthru
        _
      %p702 = scmp.le.s32.totalorder 2, %s23
      // Predicated region
      $region65: #{_mlp_2hl_forward_impl.1} parent=5 // pred_check
        %p703 = pneg %p702
      $region66: #{_mlp_2hl_forward_impl.1} parent=5 // pred_check_branch
        %705 = sbr.rel (%p703) target = $region68
      $region67: #{_mlp_2hl_forward_impl.1} parent=5 // pred_region
        %s706 = ssub.s32 %s23, 2
        // Predicated region
        $region69: #{_mlp_2hl_forward_impl.1} parent=67 // pred_check
          %p707 = pneg %p246
        $region70: #{_mlp_2hl_forward_impl.1} parent=67 // pred_check_branch
          %709 = sbr.rel (%p707) target = $region72
        $region71: #{_mlp_2hl_forward_impl.1} parent=67 // pred_region
          %s710 = sand.u32 %s231, 1
          %s711 = scalar_lea.sflag [#allocation3], %s710
          %s712 = sand.u32 %s231, 1
          %s713 = smul.addr %s712, 8
          %s714 = scalar_lea.vmem [#allocation2], %s713
          %715 = dma.done %s711, 128
        $region72: #{_mlp_2hl_forward_impl.1} parent=67 // pred_fallthru
          _
        // Predicated region
        $region73: #{_mlp_2hl_forward_impl.1} parent=67 // pred_check
          %p716 = pneg %p272
        $region74: #{_mlp_2hl_forward_impl.1} parent=67 // pred_check_branch
          %718 = sbr.rel (%p716) target = $region76
        $region75: #{_mlp_2hl_forward_impl.1} parent=67 // pred_region
          %s719 = sand.u32 %s257, 1
          %s720 = scalar_lea.sflag [#allocation5], %s719
          %s721 = sand.u32 %s257, 1
          %s722 = smul.addr %s721, 8
          %s723 = scalar_lea.vmem [#allocation4], %s722
          %724 = dma.done %s720, 128
        $region76: #{_mlp_2hl_forward_impl.1} parent=67 // pred_fallthru
          _
      $region68: #{_mlp_2hl_forward_impl.1} parent=5 // pred_fallthru
        _
    $region6: #{_mlp_2hl_forward_impl.1} parent=1 // loop_footer
      %s27 = sadd.s32 1, %s23
    $region7: #{_mlp_2hl_forward_impl.1} parent=1 // loop_footer_branch
      %22 = sbr.rel target = $region3
    $region8: #{_mlp_2hl_forward_impl.1} parent=1 // loop_exit
      _
    %725 = vsyncpa [#allocation3], 1
    %s726 = scalar_lea.sflag [#allocation3], 1
    %727 = vsyncpa %s726, 1
    %728 = vsyncpa [#allocation5], 1
    %s729 = scalar_lea.sflag [#allocation5], 1
    %730 = vsyncpa %s729, 1

</llo_original>
